<compile_context>
chip_gen: v6e
topology: v6e:2x2x1
jax: 0.10.0
libtpu: 0.0.40
codegen_flags: <defaults>
</compile_context>

<pallas_src>
import jax
import jax.numpy as jnp
from jax.experimental import pallas as pl
from jax.experimental.pallas import tpu as pltpu

_LANES = 128
_BLOCK_ROWS = 512        # 512x128 f32 tile = 256 KiB; well past the overhead regime
_NUM_SHARDS = 2          # split the norm reduction across (up to) 2 TensorCores


# --------------------------------------------------------------------------
# Kernel 1: global sum-of-squares reduction (for clip_grad_norm_'s total_norm)
#   grid = (shard [parallel], tile-within-shard [arbitrary, reduction])
#   Each shard accumulates x*x elementwise into a VMEM scratch tile (VPU only)
#   and does exactly ONE cross-lane reduce at its last step, writing its
#   partial into its own (8,128) output block.
# --------------------------------------------------------------------------
def _sumsq_kernel(x_ref, out_ref, acc_ref):
    j = pl.program_id(1)

    @pl.when(j == 0)
    def _():
        acc_ref[...] = jnp.zeros_like(acc_ref)

    x = x_ref[...].astype(jnp.float32)
    acc_ref[...] += x * x  # elementwise partials, no per-tile XLU reduce

    @pl.when(j == pl.num_programs(1) - 1)
    def _():
        total = jnp.sum(acc_ref[...])          # single XLU reduce per shard
        out_ref[...] = jnp.zeros_like(out_ref) + total


def _sumsq(x2d):
    rows = x2d.shape[0]
    tiles_per_shard = rows // (_NUM_SHARDS * _BLOCK_ROWS)  # exact (see _pack)

    out = pl.pallas_call(
        _sumsq_kernel,
        out_shape=jax.ShapeDtypeStruct((_NUM_SHARDS * 8, _LANES), jnp.float32),
        grid=(_NUM_SHARDS, tiles_per_shard),
        in_specs=[
            pl.BlockSpec((_BLOCK_ROWS, _LANES),
                         lambda s, j: (s * tiles_per_shard + j, 0)),
        ],
        out_specs=pl.BlockSpec((8, _LANES), lambda s, j: (s, 0)),
        scratch_shapes=[pltpu.VMEM((_BLOCK_ROWS, _LANES), jnp.float32)],
        compiler_params=pltpu.CompilerParams(
            dimension_semantics=("parallel", "arbitrary")),
    )(x2d)
    # One scalar per shard lives at row s*8, lane 0.
    return jnp.sum(out[::8, 0])


# --------------------------------------------------------------------------
# Kernel 2: elementwise scale (norm clip) + clamp (value clip), in place
# --------------------------------------------------------------------------
def _scale_clamp_kernel(scale_ref, clipval_ref, g_ref, o_ref):
    scale = scale_ref[0]
    cv = clipval_ref[0]
    g = g_ref[...].astype(jnp.float32) * scale
    # clip_grad_value_ is only applied when clip_val > 0 (see BaseTask)
    g = jnp.where(cv > 0.0, jnp.clip(g, -cv, cv), g)
    o_ref[...] = g.astype(o_ref.dtype)


def _scale_clamp(x2d, scale, clip_val):
    rows = x2d.shape[0]
    return pl.pallas_call(
        _scale_clamp_kernel,
        out_shape=jax.ShapeDtypeStruct(x2d.shape, x2d.dtype),
        grid=(pl.cdiv(rows, _BLOCK_ROWS),),
        in_specs=[
            pl.BlockSpec(memory_space=pltpu.MemorySpace.SMEM),
            pl.BlockSpec(memory_space=pltpu.MemorySpace.SMEM),
            pl.BlockSpec((_BLOCK_ROWS, _LANES), lambda i: (i, 0)),
        ],
        out_specs=pl.BlockSpec((_BLOCK_ROWS, _LANES), lambda i: (i, 0)),
        input_output_aliases={2: 0},   # write the clipped slab over x2d
        compiler_params=pltpu.CompilerParams(dimension_semantics=("parallel",)),
    )(scale.reshape(1), clip_val.reshape(1), x2d)


# --------------------------------------------------------------------------
# Glue (plain JAX): pack/unpack parameter list <-> (R, 128) slab
# --------------------------------------------------------------------------
def _pack(grads):
    dtypes = {jnp.dtype(g.dtype) for g in grads}
    slab_dtype = grads[0].dtype if len(dtypes) == 1 else jnp.float32
    flats = [g.reshape(-1).astype(slab_dtype) for g in grads]
    sizes = [int(f.shape[0]) for f in flats]
    flat = jnp.concatenate(flats) if len(flats) > 1 else flats[0]
    total = int(flat.shape[0])
    chunk = _NUM_SHARDS * _BLOCK_ROWS * _LANES
    padded = pl.cdiv(total, chunk) * chunk
    flat = jnp.pad(flat, (0, padded - total))
    return flat.reshape(-1, _LANES), sizes, total


def _unpack(x2d, grads, sizes, total):
    flat = x2d.reshape(-1)[:total]
    out, off = [], 0
    for g, s in zip(grads, sizes):
        out.append(flat[off:off + s].reshape(g.shape).astype(g.dtype))
        off += s
    return out


def clip_gradients(grads, clip_norm, clip_val):
    """Pallas version of the tensor math in BaseTask.on_before_optimization.

    Matches torch.nn.utils.clip_grad_norm_ (L2, eps=1e-6) followed by
    torch.nn.utils.clip_grad_value_ (each only applied when its hparam > 0).
    Returns (clipped_grads, total_norm).
    """
    x2d, sizes, total = _pack(grads)
    total_norm = jnp.sqrt(_sumsq(x2d))
    clip_norm = jnp.float32(clip_norm)
    clip_val = jnp.float32(clip_val)
    coef = jnp.where(
        clip_norm > 0.0,
        jnp.minimum(clip_norm / (total_norm + 1e-6), 1.0),
        jnp.float32(1.0),
    )
    y2d = _scale_clamp(x2d, coef, clip_val)
    return _unpack(y2d, grads, sizes, total), total_norm


# --------------------------------------------------------------------------
# Pure-JAX reference for verification
# --------------------------------------------------------------------------
def clip_gradients_ref(grads, clip_norm, clip_val):
    total_norm = jnp.sqrt(
        sum(jnp.sum(g.astype(jnp.float32) ** 2) for g in grads))
    coef = jnp.minimum(clip_norm / (total_norm + 1e-6), 1.0) if clip_norm > 0 else 1.0
    out = [g.astype(jnp.float32) * coef for g in grads]
    if clip_val > 0:
        out = [jnp.clip(g, -clip_val, clip_val) for g in out]
    return [o.astype(g.dtype) for o, g in zip(out, grads)], total_norm


if __name__ == "__main__":
    # hparams that BaseTask.__init__ reads
    hparams = {"clip_grad_norm": 1.0, "clip_grad_value": 0.05}

    # Deterministic synthetic "gradients" for a small hypothetical model
    # (BaseTask itself defines no parameters; these stand in for self.parameters()).
    key = jax.random.PRNGKey(0)
    k1, k2, k3 = jax.random.split(key, 3)
    grads = [
        jax.random.normal(k1, (32, 32), dtype=jnp.float32),  # weight grad
        jax.random.normal(k2, (32,), dtype=jnp.float32),      # bias grad
        jax.random.normal(k3, (4, 32), dtype=jnp.float32),    # head grad
    ]

    out, norm = clip_gradients(grads, hparams["clip_grad_norm"],
                               hparams["clip_grad_value"])
    out = [jax.block_until_ready(o) for o in out]
    norm = jax.block_until_ready(norm)

    ref_out, ref_norm = clip_gradients_ref(grads, hparams["clip_grad_norm"],
                                           hparams["clip_grad_value"])

    assert jnp.allclose(norm, ref_norm, rtol=1e-5, atol=1e-5), (norm, ref_norm)
    for a, b in zip(out, ref_out):
        assert a.shape == b.shape and a.dtype == b.dtype
        assert jnp.allclose(a, b, rtol=1e-5, atol=1e-6)

    print("KERNEL_OK")
</pallas_src>

<mosaic_0001>
module attributes {stable_mosaic.version = 11 : i64} {
  func.func @_sumsq_kernel(%arg0: i32, %arg1: i32, %arg2: memref<512x128xf32, #tpu.memory_space<vmem>>, %arg3: memref<8x128xf32, #tpu.memory_space<vmem>>, %arg4: memref<512x128xf32, #tpu.memory_space<vmem>>) attributes {dimension_semantics = [#tpu.dimension_semantics<parallel>, #tpu.dimension_semantics<arbitrary>], iteration_bounds = array<i64: 2, 1>, scalar_prefetch = 0 : i64, scratch_operands = 1 : i64, tpu.core_type = #tpu.core_type<tc>, window_params = [{transform_indices = @transform_0, window_bounds = array<i64: 512, 128>}, {transform_indices = @transform_1, window_bounds = array<i64: 8, 128>}]} {
    %c0_i32 = arith.constant 0 : i32
    %0 = arith.cmpi eq, %arg1, %c0_i32 : i32
    %1 = arith.extui %0 : i1 to i32
    %c0_i32_0 = arith.constant 0 : i32
    %2 = arith.cmpi ne, %1, %c0_i32_0 : i32
    scf.if %2 {
      %cst = arith.constant 0.000000e+00 : f32
      %11 = vector.broadcast %cst : f32 to vector<512x128xf32>
      %c0_8 = arith.constant 0 : index
      %c0_9 = arith.constant 0 : index
      %12 = vector.load %arg4[%c0_8, %c0_9] : memref<512x128xf32, #tpu.memory_space<vmem>>, vector<512x128xf32>
      tpu.vector_store %arg4[%c0_8, %c0_9], %11 {strides = array<i32>} : memref<512x128xf32, #tpu.memory_space<vmem>>, vector<512x128xf32>,
    } else {
    }
    %c0 = arith.constant 0 : index
    %c0_1 = arith.constant 0 : index
    %3 = vector.load %arg2[%c0, %c0_1] : memref<512x128xf32, #tpu.memory_space<vmem>>, vector<512x128xf32>
    %c0_2 = arith.constant 0 : index
    %c0_3 = arith.constant 0 : index
    %4 = vector.load %arg4[%c0_2, %c0_3] : memref<512x128xf32, #tpu.memory_space<vmem>>, vector<512x128xf32>
    %5 = arith.mulf %3, %3 : vector<512x128xf32>
    %6 = arith.addf %4, %5 : vector<512x128xf32>
    %c0_4 = arith.constant 0 : index
    %c0_5 = arith.constant 0 : index
    %7 = vector.load %arg4[%c0_4, %c0_5] : memref<512x128xf32, #tpu.memory_space<vmem>>, vector<512x128xf32>
    tpu.vector_store %arg4[%c0_4, %c0_5], %6 {strides = array<i32>} : memref<512x128xf32, #tpu.memory_space<vmem>>, vector<512x128xf32>,
    %c0_i32_6 = arith.constant 0 : i32
    %8 = arith.cmpi eq, %arg1, %c0_i32_6 : i32
    %9 = arith.extui %8 : i1 to i32
    %c0_i32_7 = arith.constant 0 : i32
    %10 = arith.cmpi ne, %9, %c0_i32_7 : i32
    scf.if %10 {
      %c0_8 = arith.constant 0 : index
      %c0_9 = arith.constant 0 : index
      %11 = vector.load %arg4[%c0_8, %c0_9] : memref<512x128xf32, #tpu.memory_space<vmem>>, vector<512x128xf32>
      %12 = vector.shape_cast %11 : vector<512x128xf32> to vector<1x512x128xf32>
      %cst = arith.constant dense<0.000000e+00> : vector<1xf32>
      %13 = vector.multi_reduction <add>, %12, %cst [1, 2] : vector<1x512x128xf32> to vector<1xf32>
      %14 = vector.shape_cast %13 : vector<1xf32> to vector<1x1x1xf32>
      %15 = vector.extract %14[0, 0, 0] : f32 from vector<1x1x1xf32>
      %cst_10 = arith.constant 0.000000e+00 : f32
      %16 = vector.broadcast %cst_10 : f32 to vector<8x128xf32>
      %17 = vector.broadcast %15 : f32 to vector<8x128xf32>
      %18 = arith.addf %16, %17 : vector<8x128xf32>
      %c0_11 = arith.constant 0 : index
      %c0_12 = arith.constant 0 : index
      %19 = vector.load %arg3[%c0_11, %c0_12] : memref<8x128xf32, #tpu.memory_space<vmem>>, vector<8x128xf32>
      tpu.vector_store %arg3[%c0_11, %c0_12], %18 {strides = array<i32>} : memref<8x128xf32, #tpu.memory_space<vmem>>, vector<8x128xf32>,
    } else {
    }
    return
  }
  func.func @transform_0(%arg0: i32, %arg1: i32) -> (i32, i32) {
    %c1_i32 = arith.constant 1 : i32
    %0 = arith.muli %arg0, %c1_i32 : i32
    %1 = arith.addi %0, %arg1 : i32
    %c0_i32 = arith.constant 0 : i32
    %c0_i32_0 = arith.constant 0 : i32
    return %1, %c0_i32 : i32, i32
  }
  func.func @transform_1(%arg0: i32, %arg1: i32) -> (i32, i32) {
    %c0_i32 = arith.constant 0 : i32
    %c0_i32_0 = arith.constant 0 : i32
    return %arg0, %c0_i32 : i32, i32
  }
}

</mosaic_0001>

<llo_original>
// kernel: tpu_custom_call.1
$region0: #{tpu_custom_call.1}
  #allocation0 [shape = 'u32[]', space=smem, size = 0x4, offset = 0x4, fixed_abs, tag = 'smem constant byte address 0x4 - core index']
  #allocation1 [shape = 'u32[144,128]{1,0:T(1,128)}', space=vmem, size = 0x12000, scoped, tag = 'internal scratch']
  #allocation2 [shape = 'f32[512,128]{1,0:T(8,128)}', space=vmem, size = 0x40000, scoped, tag = 'scratch operand']
  %s0 = inlined_call_operand.hbm [shape: f32[1024,128], index: 0, kind: input, shape index: {}]
  %s1 = inlined_call_operand.hbm [shape: f32[16,128], index: 1, kind: output, shape index: {}]
  %s2 = sld [smem:[#allocation0]]
  $region49: #{tpu_custom_call.1} parent=0
    _
  %s4 = ssub.s32 1, %s2
  %s5 = scalar_select 0, %s4, %s2
  $region1: #{tpu_custom_call.1} parent=0
    #allocation3 [shape = 'u8[524288]{0}', space=vmem, size = 0x80000, scoped, tag = 'input window, operand 0']
    #allocation4 [shape = 's32[2]{0}', space=sflag, size = 0x8, scoped, tag = 'scoped memory for tpu_custom_call.1']
    #allocation5 [shape = 's32[2]{0}', space=sflag, size = 0x8, scoped, tag = 'scoped memory for tpu_custom_call.1']
    #allocation6 [shape = 'u8[8192]{0}', space=vmem, size = 0x2000, scoped, tag = 'output window, operand 0']
    %6 = vsyncpa [#allocation4], 0
    %s7 = scalar_lea.sflag [#allocation4], 1
    %8 = vsyncpa %s7, 0
    %9 = vsyncpa [#allocation5], 0
    %s10 = scalar_lea.sflag [#allocation5], 1
    %11 = vsyncpa %s10, 0
    loop: start=0, step=1, limit=4
    $region2: #{tpu_custom_call.1} parent=1 // loop_pre_header
      _
    $region3: #{tpu_custom_call.1} parent=1 // loop_header
      %s13 = sphi 0, %s17
      %p14 = scmp.ge.s32.totalorder %s13, 4
      %s20 = sphi 0, %s32
      %s21 = sphi 0, %s28
      %s22 = sphi 0, %s20
      %s23 = sphi 0, %s21
      %s24 = sphi 0, %s22
      %s25 = sphi 0, %s23
      %s37 = sphi 0, %s39
      %s40 = sphi 0, %s37
      %s41 = sphi 0, %s40
      %s57 = sphi 0, %s41
      %s63 = sphi 0, %s65
      %s66 = sphi 0, %s63
      %s67 = sphi 0, %s66
      %s83 = sphi 0, %s67
    $region4: #{tpu_custom_call.1} parent=1 // loop_header_branch
      %16 = sbr.rel (%p14) target = $region8
    $region5: #{tpu_custom_call.1} parent=1 // loop_body
      %s18 = ssub.s32 %s13, 1
      %s19 = ssub.s32 %s13, 2
      %s26 = sadd.s32 1, %s21
      %p27 = scmp.ge.s32.totalorder %s26, 1
      %s28 = scalar_select %p27, 0, %s26
      %s29 = sadd.s32 1, %s20
      %s30 = scalar_select %p27, %s29, %s20
      %p31 = scmp.ge.s32.totalorder %s30, 2
      %s32 = scalar_select %p31, 0, %s30
      %s33 = sadd.s32 %s20, %s21
      %s34 = sadd.s32 %s32, %s28
      %s35 = ssub.s32 %s33, %s34
      %p36 = scmp.eq.s32.totalorder %s35, 0
      %s38 = sadd.s32 %s37, 1
      %s39 = scalar_select %p36, %s37, %s38
      %p42 = pneg %p36
      %p43 = scmp.eq.s32.totalorder %s13, 1
      %p44 = por %p42, %p43
      %p45 = scmp.ne.s32.totalorder %s37, %s40
      %p46 = scmp.eq.s32.totalorder %s13, 0
      %p47 = por %p45, %p46
      %p48 = scmp.ne.s32.totalorder %s37, %s40
      %p49 = scmp.eq.s32.totalorder %s18, 1
      %p50 = por %p48, %p49
      %p51 = scmp.ne.s32.totalorder %s40, %s41
      %p52 = scmp.eq.s32.totalorder %s18, 0
      %p53 = por %p51, %p52
      %p54 = scmp.ne.s32.totalorder %s40, %s41
      %p55 = scmp.eq.s32.totalorder %s19, 1
      %p56 = por %p54, %p55
      %p58 = scmp.ne.s32.totalorder %s41, %s57
      %p59 = scmp.eq.s32.totalorder %s19, 0
      %p60 = por %p58, %p59
      %s61 = ssub.s32 %s20, %s32
      %p62 = scmp.eq.s32.totalorder %s61, 0
      %s64 = sadd.s32 %s63, 1
      %s65 = scalar_select %p62, %s63, %s64
      %p68 = pneg %p62
      %p69 = scmp.eq.s32.totalorder %s13, 1
      %p70 = por %p68, %p69
      %p71 = scmp.ne.s32.totalorder %s63, %s66
      %p72 = scmp.eq.s32.totalorder %s13, 0
      %p73 = por %p71, %p72
      %p74 = scmp.ne.s32.totalorder %s63, %s66
      %p75 = scmp.eq.s32.totalorder %s18, 1
      %p76 = por %p74, %p75
      %p77 = scmp.ne.s32.totalorder %s66, %s67
      %p78 = scmp.eq.s32.totalorder %s18, 0
      %p79 = por %p77, %p78
      %p80 = scmp.ne.s32.totalorder %s66, %s67
      %p81 = scmp.eq.s32.totalorder %s19, 1
      %p82 = por %p80, %p81
      %p84 = scmp.ne.s32.totalorder %s67, %s83
      %p85 = scmp.eq.s32.totalorder %s19, 0
      %p86 = por %p84, %p85
      %p87 = scmp.le.s32.totalorder 1, %s13
      %p88 = scmp.lt.s32.totalorder %s13, 3
      %p89 = pnand %p87, %p88
      %p90 = pneg %p89
      // Predicated region
      $region9: #{tpu_custom_call.1} parent=5 // pred_check
        _
      $region10: #{tpu_custom_call.1} parent=5 // pred_check_branch
        %92 = sbr.rel (%p89) target = $region12
      $region11: #{tpu_custom_call.1} parent=5 // pred_region
        %s93 = ssub.s32 %s13, 1
      $region12: #{tpu_custom_call.1} parent=5 // pred_fallthru
        _
      %p94 = scmp.lt.s32.totalorder %s13, 2
      // Predicated region
      $region13: #{tpu_custom_call.1} parent=5 // pred_check
        %p95 = pneg %p94
      $region14: #{tpu_custom_call.1} parent=5 // pred_check_branch
        %97 = sbr.rel (%p95) target = $region16
      $region15: #{tpu_custom_call.1} parent=5 // pred_region
        // Predicated region
        $region17: #{tpu_custom_call.1} parent=15 // pred_check
          %p98 = pneg %p47
        $region18: #{tpu_custom_call.1} parent=15 // pred_check_branch
          %100 = sbr.rel (%p98) target = $region20
        $region19: #{tpu_custom_call.1} parent=15 // pred_region
          %s101 = sand.u32 %s37, 1
          %s102 = scalar_lea.sflag [#allocation4], %s101
          %s103 = sand.u32 %s37, 1
          %s104 = smul.addr %s103, 512
          %s105 = scalar_lea.vmem [#allocation3], %s104
          %s106 = sadd.s32 %s20, %s21
          %s107 = smul.u32 64, %s106
          %s109 = ssub.s32 8192, 8192
          %110 = vsyncadd %s102, %s109
          %s111 = smul.addr %s107, 128
          %s112 = scalar_lea.hbm %s0, %s111
          %s113 = sshll.u32 %s105, 4
          %s114 = int_to_ptr.vmem [resolvable:$true] %s113
          %119 = dma.hbm_to_vmem [thread:$0]  %s112, 8192, %s114, %s102, 128, 128, 8
        $region20: #{tpu_custom_call.1} parent=15 // pred_fallthru
          _
      $region16: #{tpu_custom_call.1} parent=5 // pred_fallthru
        _
      %p120 = scmp.le.s32.totalorder 1, %s13
      %p121 = scmp.lt.s32.totalorder %s13, 3
      %p122 = pnand %p120, %p121
      %p123 = pneg %p122
      // Predicated region
      $region21: #{tpu_custom_call.1} parent=5 // pred_check
        _
      $region22: #{tpu_custom_call.1} parent=5 // pred_check_branch
        %125 = sbr.rel (%p122) target = $region24
      $region23: #{tpu_custom_call.1} parent=5 // pred_region
        %s126 = ssub.s32 %s13, 1
        %s127 = sand.u32 %s40, 1
        %s128 = scalar_lea.sflag [#allocation4], %s127
        %s129 = sand.u32 %s40, 1
        %s130 = smul.addr %s129, 512
        %s131 = scalar_lea.vmem [#allocation3], %s130
        // Predicated region
        $region25: #{tpu_custom_call.1} parent=23 // pred_check
          %p132 = pneg %p53
        $region26: #{tpu_custom_call.1} parent=23 // pred_check_branch
          %134 = sbr.rel (%p132) target = $region28
        $region27: #{tpu_custom_call.1} parent=23 // pred_region
          %135 = dma.done %s128, 8192
        $region28: #{tpu_custom_call.1} parent=23 // pred_fallthru
          _
        %s136 = sand.u32 %s40, 1
        %s137 = scalar_lea.sflag [#allocation4], %s136
        %s138 = sand.u32 %s40, 1
        %s139 = smul.addr %s138, 512
        %s140 = scalar_lea.vmem [#allocation3], %s139
        %p141 = pneg %p53
        %p142 = pneg %p50
        %p143 = pneg %p79
        %p144 = pneg %p76
        %s145 = sand.u32 %s66, 1
        %s146 = scalar_lea.sflag [#allocation5], %s145
        %s147 = sand.u32 %s66, 1
        %s148 = smul.addr %s147, 8
        %s149 = scalar_lea.vmem [#allocation6], %s148
        %s150 = sadd.s32 %s22, %s23
        %s151 = smul.u32 64, %s150
        %p152 = scmp.eq.s32.totalorder %s23, 0
        // Predicated region
        $region29: #{tpu_custom_call.1} parent=23 // pred_check
          %p153 = pneg %p152
        $region30: #{tpu_custom_call.1} parent=23 // pred_check_branch
          %155 = sbr.rel (%p153) target = $region32
        $region31: #{tpu_custom_call.1} parent=23 // pred_region
          %156 = vst [vmem:[#allocation2] sm:$0xff] 0.0
          %157 = vst [vmem:[#allocation2 + $0x8] sm:$0xff] 0.0
          %158 = vst [vmem:[#allocation2 + $0x10] sm:$0xff] 0.0
          %159 = vst [vmem:[#allocation2 + $0x18] sm:$0xff] 0.0
          %160 = vst [vmem:[#allocation2 + $0x20] sm:$0xff] 0.0
          %161 = vst [vmem:[#allocation2 + $0x28] sm:$0xff] 0.0
          %162 = vst [vmem:[#allocation2 + $0x30] sm:$0xff] 0.0
          %163 = vst [vmem:[#allocation2 + $0x38] sm:$0xff] 0.0
          %164 = vst [vmem:[#allocation2 + $0x40] sm:$0xff] 0.0
          %165 = vst [vmem:[#allocation2 + $0x48] sm:$0xff] 0.0
          %166 = vst [vmem:[#allocation2 + $0x50] sm:$0xff] 0.0
          %167 = vst [vmem:[#allocation2 + $0x58] sm:$0xff] 0.0
          %168 = vst [vmem:[#allocation2 + $0x60] sm:$0xff] 0.0
          %169 = vst [vmem:[#allocation2 + $0x68] sm:$0xff] 0.0
          %170 = vst [vmem:[#allocation2 + $0x70] sm:$0xff] 0.0
          %171 = vst [vmem:[#allocation2 + $0x78] sm:$0xff] 0.0
          %172 = vst [vmem:[#allocation2 + $0x80] sm:$0xff] 0.0
          %173 = vst [vmem:[#allocation2 + $0x88] sm:$0xff] 0.0
          %174 = vst [vmem:[#allocation2 + $0x90] sm:$0xff] 0.0
          %175 = vst [vmem:[#allocation2 + $0x98] sm:$0xff] 0.0
          %176 = vst [vmem:[#allocation2 + $0xa0] sm:$0xff] 0.0
          %177 = vst [vmem:[#allocation2 + $0xa8] sm:$0xff] 0.0
          %178 = vst [vmem:[#allocation2 + $0xb0] sm:$0xff] 0.0
          %179 = vst [vmem:[#allocation2 + $0xb8] sm:$0xff] 0.0
          %180 = vst [vmem:[#allocation2 + $0xc0] sm:$0xff] 0.0
          %181 = vst [vmem:[#allocation2 + $0xc8] sm:$0xff] 0.0
          %182 = vst [vmem:[#allocation2 + $0xd0] sm:$0xff] 0.0
          %183 = vst [vmem:[#allocation2 + $0xd8] sm:$0xff] 0.0
          %184 = vst [vmem:[#allocation2 + $0xe0] sm:$0xff] 0.0
          %185 = vst [vmem:[#allocation2 + $0xe8] sm:$0xff] 0.0
          %186 = vst [vmem:[#allocation2 + $0xf0] sm:$0xff] 0.0
          %187 = vst [vmem:[#allocation2 + $0xf8] sm:$0xff] 0.0
          %188 = vst [vmem:[#allocation2 + $0x100] sm:$0xff] 0.0
          %189 = vst [vmem:[#allocation2 + $0x108] sm:$0xff] 0.0
          %190 = vst [vmem:[#allocation2 + $0x110] sm:$0xff] 0.0
          %191 = vst [vmem:[#allocation2 + $0x118] sm:$0xff] 0.0
          %192 = vst [vmem:[#allocation2 + $0x120] sm:$0xff] 0.0
          %193 = vst [vmem:[#allocation2 + $0x128] sm:$0xff] 0.0
          %194 = vst [vmem:[#allocation2 + $0x130] sm:$0xff] 0.0
          %195 = vst [vmem:[#allocation2 + $0x138] sm:$0xff] 0.0
          %196 = vst [vmem:[#allocation2 + $0x140] sm:$0xff] 0.0
          %197 = vst [vmem:[#allocation2 + $0x148] sm:$0xff] 0.0
          %198 = vst [vmem:[#allocation2 + $0x150] sm:$0xff] 0.0
          %199 = vst [vmem:[#allocation2 + $0x158] sm:$0xff] 0.0
          %200 = vst [vmem:[#allocation2 + $0x160] sm:$0xff] 0.0
          %201 = vst [vmem:[#allocation2 + $0x168] sm:$0xff] 0.0
          %202 = vst [vmem:[#allocation2 + $0x170] sm:$0xff] 0.0
          %203 = vst [vmem:[#allocation2 + $0x178] sm:$0xff] 0.0
          %204 = vst [vmem:[#allocation2 + $0x180] sm:$0xff] 0.0
          %205 = vst [vmem:[#allocation2 + $0x188] sm:$0xff] 0.0
          %206 = vst [vmem:[#allocation2 + $0x190] sm:$0xff] 0.0
          %207 = vst [vmem:[#allocation2 + $0x198] sm:$0xff] 0.0
          %208 = vst [vmem:[#allocation2 + $0x1a0] sm:$0xff] 0.0
          %209 = vst [vmem:[#allocation2 + $0x1a8] sm:$0xff] 0.0
          %210 = vst [vmem:[#allocation2 + $0x1b0] sm:$0xff] 0.0
          %211 = vst [vmem:[#allocation2 + $0x1b8] sm:$0xff] 0.0
          %212 = vst [vmem:[#allocation2 + $0x1c0] sm:$0xff] 0.0
          %213 = vst [vmem:[#allocation2 + $0x1c8] sm:$0xff] 0.0
          %214 = vst [vmem:[#allocation2 + $0x1d0] sm:$0xff] 0.0
          %215 = vst [vmem:[#allocation2 + $0x1d8] sm:$0xff] 0.0
          %216 = vst [vmem:[#allocation2 + $0x1e0] sm:$0xff] 0.0
          %217 = vst [vmem:[#allocation2 + $0x1e8] sm:$0xff] 0.0
          %218 = vst [vmem:[#allocation2 + $0x1f0] sm:$0xff] 0.0
          %219 = vst [vmem:[#allocation2 + $0x1f8] sm:$0xff] 0.0
        $region32: #{tpu_custom_call.1} parent=23 // pred_fallthru
          _
        %v220 = vld [vmem:[%s131] sm:$0xff]
        %v221 = vld [vmem:[%s131 + $0x8] sm:$0xff]
        %v222 = vld [vmem:[%s131 + $0x10] sm:$0xff]
        %v223 = vld [vmem:[%s131 + $0x18] sm:$0xff]
        %v224 = vld [vmem:[%s131 + $0x20] sm:$0xff]
        %v225 = vld [vmem:[%s131 + $0x28] sm:$0xff]
        %v226 = vld [vmem:[%s131 + $0x30] sm:$0xff]
        %v227 = vld [vmem:[%s131 + $0x38] sm:$0xff]
        %v228 = vld [vmem:[%s131 + $0x40] sm:$0xff]
        %v229 = vld [vmem:[%s131 + $0x48] sm:$0xff]
        %v230 = vld [vmem:[%s131 + $0x50] sm:$0xff]
        %v231 = vld [vmem:[%s131 + $0x58] sm:$0xff]
        %v232 = vld [vmem:[%s131 + $0x60] sm:$0xff]
        %v233 = vld [vmem:[%s131 + $0x68] sm:$0xff]
        %v234 = vld [vmem:[%s131 + $0x70] sm:$0xff]
        %v235 = vld [vmem:[%s131 + $0x78] sm:$0xff]
        %v236 = vld [vmem:[%s131 + $0x80] sm:$0xff]
        %v237 = vld [vmem:[%s131 + $0x88] sm:$0xff]
        %v238 = vld [vmem:[%s131 + $0x90] sm:$0xff]
        %v239 = vld [vmem:[%s131 + $0x98] sm:$0xff]
        %v240 = vld [vmem:[%s131 + $0xa0] sm:$0xff]
        %v241 = vld [vmem:[%s131 + $0xa8] sm:$0xff]
        %v242 = vld [vmem:[%s131 + $0xb0] sm:$0xff]
        %v243 = vld [vmem:[%s131 + $0xb8] sm:$0xff]
        %v244 = vld [vmem:[%s131 + $0xc0] sm:$0xff]
        %v245 = vld [vmem:[%s131 + $0xc8] sm:$0xff]
        %v246 = vld [vmem:[%s131 + $0xd0] sm:$0xff]
        %v247 = vld [vmem:[%s131 + $0xd8] sm:$0xff]
        %v248 = vld [vmem:[%s131 + $0xe0] sm:$0xff]
        %v249 = vld [vmem:[%s131 + $0xe8] sm:$0xff]
        %v250 = vld [vmem:[%s131 + $0xf0] sm:$0xff]
        %v251 = vld [vmem:[%s131 + $0xf8] sm:$0xff]
        %v252 = vld [vmem:[%s131 + $0x100] sm:$0xff]
        %v253 = vld [vmem:[%s131 + $0x108] sm:$0xff]
        %v254 = vld [vmem:[%s131 + $0x110] sm:$0xff]
        %v255 = vld [vmem:[%s131 + $0x118] sm:$0xff]
        %v256 = vld [vmem:[%s131 + $0x120] sm:$0xff]
        %v257 = vld [vmem:[%s131 + $0x128] sm:$0xff]
        %v258 = vld [vmem:[%s131 + $0x130] sm:$0xff]
        %v259 = vld [vmem:[%s131 + $0x138] sm:$0xff]
        %v260 = vld [vmem:[%s131 + $0x140] sm:$0xff]
        %v261 = vld [vmem:[%s131 + $0x148] sm:$0xff]
        %v262 = vld [vmem:[%s131 + $0x150] sm:$0xff]
        %v263 = vld [vmem:[%s131 + $0x158] sm:$0xff]
        %v264 = vld [vmem:[%s131 + $0x160] sm:$0xff]
        %v265 = vld [vmem:[%s131 + $0x168] sm:$0xff]
        %v266 = vld [vmem:[%s131 + $0x170] sm:$0xff]
        %v267 = vld [vmem:[%s131 + $0x178] sm:$0xff]
        %v268 = vld [vmem:[%s131 + $0x180] sm:$0xff]
        %v269 = vld [vmem:[%s131 + $0x188] sm:$0xff]
        %v270 = vld [vmem:[%s131 + $0x190] sm:$0xff]
        %v271 = vld [vmem:[%s131 + $0x198] sm:$0xff]
        %v272 = vld [vmem:[%s131 + $0x1a0] sm:$0xff]
        %v273 = vld [vmem:[%s131 + $0x1a8] sm:$0xff]
        %v274 = vld [vmem:[%s131 + $0x1b0] sm:$0xff]
        %v275 = vld [vmem:[%s131 + $0x1b8] sm:$0xff]
        %v276 = vld [vmem:[%s131 + $0x1c0] sm:$0xff]
        %v277 = vld [vmem:[%s131 + $0x1c8] sm:$0xff]
        %v278 = vld [vmem:[%s131 + $0x1d0] sm:$0xff]
        %v279 = vld [vmem:[%s131 + $0x1d8] sm:$0xff]
        %v280 = vld [vmem:[%s131 + $0x1e0] sm:$0xff]
        %v281 = vld [vmem:[%s131 + $0x1e8] sm:$0xff]
        %v282 = vld [vmem:[%s131 + $0x1f0] sm:$0xff]
        %v283 = vld [vmem:[%s131 + $0x1f8] sm:$0xff]
        %v284 = vld [vmem:[#allocation2] sm:$0xff]
        %v285 = vld [vmem:[#allocation2 + $0x8] sm:$0xff]
        %v286 = vld [vmem:[#allocation2 + $0x10] sm:$0xff]
        %v287 = vld [vmem:[#allocation2 + $0x18] sm:$0xff]
        %v288 = vld [vmem:[#allocation2 + $0x20] sm:$0xff]
        %v289 = vld [vmem:[#allocation2 + $0x28] sm:$0xff]
        %v290 = vld [vmem:[#allocation2 + $0x30] sm:$0xff]
        %v291 = vld [vmem:[#allocation2 + $0x38] sm:$0xff]
        %v292 = vld [vmem:[#allocation2 + $0x40] sm:$0xff]
        %v293 = vld [vmem:[#allocation2 + $0x48] sm:$0xff]
        %v294 = vld [vmem:[#allocation2 + $0x50] sm:$0xff]
        %v295 = vld [vmem:[#allocation2 + $0x58] sm:$0xff]
        %v296 = vld [vmem:[#allocation2 + $0x60] sm:$0xff]
        %v297 = vld [vmem:[#allocation2 + $0x68] sm:$0xff]
        %v298 = vld [vmem:[#allocation2 + $0x70] sm:$0xff]
        %v299 = vld [vmem:[#allocation2 + $0x78] sm:$0xff]
        %v300 = vld [vmem:[#allocation2 + $0x80] sm:$0xff]
        %v301 = vld [vmem:[#allocation2 + $0x88] sm:$0xff]
        %v302 = vld [vmem:[#allocation2 + $0x90] sm:$0xff]
        %v303 = vld [vmem:[#allocation2 + $0x98] sm:$0xff]
        %v304 = vld [vmem:[#allocation2 + $0xa0] sm:$0xff]
        %v305 = vld [vmem:[#allocation2 + $0xa8] sm:$0xff]
        %v306 = vld [vmem:[#allocation2 + $0xb0] sm:$0xff]
        %v307 = vld [vmem:[#allocation2 + $0xb8] sm:$0xff]
        %v308 = vld [vmem:[#allocation2 + $0xc0] sm:$0xff]
        %v309 = vld [vmem:[#allocation2 + $0xc8] sm:$0xff]
        %v310 = vld [vmem:[#allocation2 + $0xd0] sm:$0xff]
        %v311 = vld [vmem:[#allocation2 + $0xd8] sm:$0xff]
        %v312 = vld [vmem:[#allocation2 + $0xe0] sm:$0xff]
        %v313 = vld [vmem:[#allocation2 + $0xe8] sm:$0xff]
        %v314 = vld [vmem:[#allocation2 + $0xf0] sm:$0xff]
        %v315 = vld [vmem:[#allocation2 + $0xf8] sm:$0xff]
        %v316 = vld [vmem:[#allocation2 + $0x100] sm:$0xff]
        %v317 = vld [vmem:[#allocation2 + $0x108] sm:$0xff]
        %v318 = vld [vmem:[#allocation2 + $0x110] sm:$0xff]
        %v319 = vld [vmem:[#allocation2 + $0x118] sm:$0xff]
        %v320 = vld [vmem:[#allocation2 + $0x120] sm:$0xff]
        %v321 = vld [vmem:[#allocation2 + $0x128] sm:$0xff]
        %v322 = vld [vmem:[#allocation2 + $0x130] sm:$0xff]
        %v323 = vld [vmem:[#allocation2 + $0x138] sm:$0xff]
        %v324 = vld [vmem:[#allocation2 + $0x140] sm:$0xff]
        %v325 = vld [vmem:[#allocation2 + $0x148] sm:$0xff]
        %v326 = vld [vmem:[#allocation2 + $0x150] sm:$0xff]
        %v327 = vld [vmem:[#allocation2 + $0x158] sm:$0xff]
        %v328 = vld [vmem:[#allocation2 + $0x160] sm:$0xff]
        %v329 = vld [vmem:[#allocation2 + $0x168] sm:$0xff]
        %v330 = vld [vmem:[#allocation2 + $0x170] sm:$0xff]
        %v331 = vld [vmem:[#allocation2 + $0x178] sm:$0xff]
        %v332 = vld [vmem:[#allocation2 + $0x180] sm:$0xff]
        %v333 = vld [vmem:[#allocation2 + $0x188] sm:$0xff]
        %v334 = vld [vmem:[#allocation2 + $0x190] sm:$0xff]
        %v335 = vld [vmem:[#allocation2 + $0x198] sm:$0xff]
        %v336 = vld [vmem:[#allocation2 + $0x1a0] sm:$0xff]
        %v337 = vld [vmem:[#allocation2 + $0x1a8] sm:$0xff]
        %v338 = vld [vmem:[#allocation2 + $0x1b0] sm:$0xff]
        %v339 = vld [vmem:[#allocation2 + $0x1b8] sm:$0xff]
        %v340 = vld [vmem:[#allocation2 + $0x1c0] sm:$0xff]
        %v341 = vld [vmem:[#allocation2 + $0x1c8] sm:$0xff]
        %v342 = vld [vmem:[#allocation2 + $0x1d0] sm:$0xff]
        %v343 = vld [vmem:[#allocation2 + $0x1d8] sm:$0xff]
        %v344 = vld [vmem:[#allocation2 + $0x1e0] sm:$0xff]
        %v345 = vld [vmem:[#allocation2 + $0x1e8] sm:$0xff]
        %v346 = vld [vmem:[#allocation2 + $0x1f0] sm:$0xff]
        %v347 = vld [vmem:[#allocation2 + $0x1f8] sm:$0xff]
        %v348 = vmul.f32 %v220, %v220
        %v349 = vmul.f32 %v221, %v221
        %v350 = vmul.f32 %v222, %v222
        %v351 = vmul.f32 %v223, %v223
        %v352 = vmul.f32 %v224, %v224
        %v353 = vmul.f32 %v225, %v225
        %v354 = vmul.f32 %v226, %v226
        %v355 = vmul.f32 %v227, %v227
        %v356 = vmul.f32 %v228, %v228
        %v357 = vmul.f32 %v229, %v229
        %v358 = vmul.f32 %v230, %v230
        %v359 = vmul.f32 %v231, %v231
        %v360 = vmul.f32 %v232, %v232
        %v361 = vmul.f32 %v233, %v233
        %v362 = vmul.f32 %v234, %v234
        %v363 = vmul.f32 %v235, %v235
        %v364 = vmul.f32 %v236, %v236
        %v365 = vmul.f32 %v237, %v237
        %v366 = vmul.f32 %v238, %v238
        %v367 = vmul.f32 %v239, %v239
        %v368 = vmul.f32 %v240, %v240
        %v369 = vmul.f32 %v241, %v241
        %v370 = vmul.f32 %v242, %v242
        %v371 = vmul.f32 %v243, %v243
        %v372 = vmul.f32 %v244, %v244
        %v373 = vmul.f32 %v245, %v245
        %v374 = vmul.f32 %v246, %v246
        %v375 = vmul.f32 %v247, %v247
        %v376 = vmul.f32 %v248, %v248
        %v377 = vmul.f32 %v249, %v249
        %v378 = vmul.f32 %v250, %v250
        %v379 = vmul.f32 %v251, %v251
        %v380 = vmul.f32 %v252, %v252
        %v381 = vmul.f32 %v253, %v253
        %v382 = vmul.f32 %v254, %v254
        %v383 = vmul.f32 %v255, %v255
        %v384 = vmul.f32 %v256, %v256
        %v385 = vmul.f32 %v257, %v257
        %v386 = vmul.f32 %v258, %v258
        %v387 = vmul.f32 %v259, %v259
        %v388 = vmul.f32 %v260, %v260
        %v389 = vmul.f32 %v261, %v261
        %v390 = vmul.f32 %v262, %v262
        %v391 = vmul.f32 %v263, %v263
        %v392 = vmul.f32 %v264, %v264
        %v393 = vmul.f32 %v265, %v265
        %v394 = vmul.f32 %v266, %v266
        %v395 = vmul.f32 %v267, %v267
        %v396 = vmul.f32 %v268, %v268
        %v397 = vmul.f32 %v269, %v269
        %v398 = vmul.f32 %v270, %v270
        %v399 = vmul.f32 %v271, %v271
        %v400 = vmul.f32 %v272, %v272
        %v401 = vmul.f32 %v273, %v273
        %v402 = vmul.f32 %v274, %v274
        %v403 = vmul.f32 %v275, %v275
        %v404 = vmul.f32 %v276, %v276
        %v405 = vmul.f32 %v277, %v277
        %v406 = vmul.f32 %v278, %v278
        %v407 = vmul.f32 %v279, %v279
        %v408 = vmul.f32 %v280, %v280
        %v409 = vmul.f32 %v281, %v281
        %v410 = vmul.f32 %v282, %v282
        %v411 = vmul.f32 %v283, %v283
        %v412 = vadd.f32 %v284, %v348
        %v413 = vadd.f32 %v285, %v349
        %v414 = vadd.f32 %v286, %v350
        %v415 = vadd.f32 %v287, %v351
        %v416 = vadd.f32 %v288, %v352
        %v417 = vadd.f32 %v289, %v353
        %v418 = vadd.f32 %v290, %v354
        %v419 = vadd.f32 %v291, %v355
        %v420 = vadd.f32 %v292, %v356
        %v421 = vadd.f32 %v293, %v357
        %v422 = vadd.f32 %v294, %v358
        %v423 = vadd.f32 %v295, %v359
        %v424 = vadd.f32 %v296, %v360
        %v425 = vadd.f32 %v297, %v361
        %v426 = vadd.f32 %v298, %v362
        %v427 = vadd.f32 %v299, %v363
        %v428 = vadd.f32 %v300, %v364
        %v429 = vadd.f32 %v301, %v365
        %v430 = vadd.f32 %v302, %v366
        %v431 = vadd.f32 %v303, %v367
        %v432 = vadd.f32 %v304, %v368
        %v433 = vadd.f32 %v305, %v369
        %v434 = vadd.f32 %v306, %v370
        %v435 = vadd.f32 %v307, %v371
        %v436 = vadd.f32 %v308, %v372
        %v437 = vadd.f32 %v309, %v373
        %v438 = vadd.f32 %v310, %v374
        %v439 = vadd.f32 %v311, %v375
        %v440 = vadd.f32 %v312, %v376
        %v441 = vadd.f32 %v313, %v377
        %v442 = vadd.f32 %v314, %v378
        %v443 = vadd.f32 %v315, %v379
        %v444 = vadd.f32 %v316, %v380
        %v445 = vadd.f32 %v317, %v381
        %v446 = vadd.f32 %v318, %v382
        %v447 = vadd.f32 %v319, %v383
        %v448 = vadd.f32 %v320, %v384
        %v449 = vadd.f32 %v321, %v385
        %v450 = vadd.f32 %v322, %v386
        %v451 = vadd.f32 %v323, %v387
        %v452 = vadd.f32 %v324, %v388
        %v453 = vadd.f32 %v325, %v389
        %v454 = vadd.f32 %v326, %v390
        %v455 = vadd.f32 %v327, %v391
        %v456 = vadd.f32 %v328, %v392
        %v457 = vadd.f32 %v329, %v393
        %v458 = vadd.f32 %v330, %v394
        %v459 = vadd.f32 %v331, %v395
        %v460 = vadd.f32 %v332, %v396
        %v461 = vadd.f32 %v333, %v397
        %v462 = vadd.f32 %v334, %v398
        %v463 = vadd.f32 %v335, %v399
        %v464 = vadd.f32 %v336, %v400
        %v465 = vadd.f32 %v337, %v401
        %v466 = vadd.f32 %v338, %v402
        %v467 = vadd.f32 %v339, %v403
        %v468 = vadd.f32 %v340, %v404
        %v469 = vadd.f32 %v341, %v405
        %v470 = vadd.f32 %v342, %v406
        %v471 = vadd.f32 %v343, %v407
        %v472 = vadd.f32 %v344, %v408
        %v473 = vadd.f32 %v345, %v409
        %v474 = vadd.f32 %v346, %v410
        %v475 = vadd.f32 %v347, %v411
        %476 = vst [vmem:[#allocation2] sm:$0xff] %v412
        %477 = vst [vmem:[#allocation2 + $0x8] sm:$0xff] %v413
        %478 = vst [vmem:[#allocation2 + $0x10] sm:$0xff] %v414
        %479 = vst [vmem:[#allocation2 + $0x18] sm:$0xff] %v415
        %480 = vst [vmem:[#allocation2 + $0x20] sm:$0xff] %v416
        %481 = vst [vmem:[#allocation2 + $0x28] sm:$0xff] %v417
        %482 = vst [vmem:[#allocation2 + $0x30] sm:$0xff] %v418
        %483 = vst [vmem:[#allocation2 + $0x38] sm:$0xff] %v419
        %484 = vst [vmem:[#allocation2 + $0x40] sm:$0xff] %v420
        %485 = vst [vmem:[#allocation2 + $0x48] sm:$0xff] %v421
        %486 = vst [vmem:[#allocation2 + $0x50] sm:$0xff] %v422
        %487 = vst [vmem:[#allocation2 + $0x58] sm:$0xff] %v423
        %488 = vst [vmem:[#allocation2 + $0x60] sm:$0xff] %v424
        %489 = vst [vmem:[#allocation2 + $0x68] sm:$0xff] %v425
        %490 = vst [vmem:[#allocation2 + $0x70] sm:$0xff] %v426
        %491 = vst [vmem:[#allocation2 + $0x78] sm:$0xff] %v427
        %492 = vst [vmem:[#allocation2 + $0x80] sm:$0xff] %v428
        %493 = vst [vmem:[#allocation2 + $0x88] sm:$0xff] %v429
        %494 = vst [vmem:[#allocation2 + $0x90] sm:$0xff] %v430
        %495 = vst [vmem:[#allocation2 + $0x98] sm:$0xff] %v431
        %496 = vst [vmem:[#allocation2 + $0xa0] sm:$0xff] %v432
        %497 = vst [vmem:[#allocation2 + $0xa8] sm:$0xff] %v433
        %498 = vst [vmem:[#allocation2 + $0xb0] sm:$0xff] %v434
        %499 = vst [vmem:[#allocation2 + $0xb8] sm:$0xff] %v435
        %500 = vst [vmem:[#allocation2 + $0xc0] sm:$0xff] %v436
        %501 = vst [vmem:[#allocation2 + $0xc8] sm:$0xff] %v437
        %502 = vst [vmem:[#allocation2 + $0xd0] sm:$0xff] %v438
        %503 = vst [vmem:[#allocation2 + $0xd8] sm:$0xff] %v439
        %504 = vst [vmem:[#allocation2 + $0xe0] sm:$0xff] %v440
        %505 = vst [vmem:[#allocation2 + $0xe8] sm:$0xff] %v441
        %506 = vst [vmem:[#allocation2 + $0xf0] sm:$0xff] %v442
        %507 = vst [vmem:[#allocation2 + $0xf8] sm:$0xff] %v443
        %508 = vst [vmem:[#allocation2 + $0x100] sm:$0xff] %v444
        %509 = vst [vmem:[#allocation2 + $0x108] sm:$0xff] %v445
        %510 = vst [vmem:[#allocation2 + $0x110] sm:$0xff] %v446
        %511 = vst [vmem:[#allocation2 + $0x118] sm:$0xff] %v447
        %512 = vst [vmem:[#allocation2 + $0x120] sm:$0xff] %v448
        %513 = vst [vmem:[#allocation2 + $0x128] sm:$0xff] %v449
        %514 = vst [vmem:[#allocation2 + $0x130] sm:$0xff] %v450
        %515 = vst [vmem:[#allocation2 + $0x138] sm:$0xff] %v451
        %516 = vst [vmem:[#allocation2 + $0x140] sm:$0xff] %v452
        %517 = vst [vmem:[#allocation2 + $0x148] sm:$0xff] %v453
        %518 = vst [vmem:[#allocation2 + $0x150] sm:$0xff] %v454
        %519 = vst [vmem:[#allocation2 + $0x158] sm:$0xff] %v455
        %520 = vst [vmem:[#allocation2 + $0x160] sm:$0xff] %v456
        %521 = vst [vmem:[#allocation2 + $0x168] sm:$0xff] %v457
        %522 = vst [vmem:[#allocation2 + $0x170] sm:$0xff] %v458
        %523 = vst [vmem:[#allocation2 + $0x178] sm:$0xff] %v459
        %524 = vst [vmem:[#allocation2 + $0x180] sm:$0xff] %v460
        %525 = vst [vmem:[#allocation2 + $0x188] sm:$0xff] %v461
        %526 = vst [vmem:[#allocation2 + $0x190] sm:$0xff] %v462
        %527 = vst [vmem:[#allocation2 + $0x198] sm:$0xff] %v463
        %528 = vst [vmem:[#allocation2 + $0x1a0] sm:$0xff] %v464
        %529 = vst [vmem:[#allocation2 + $0x1a8] sm:$0xff] %v465
        %530 = vst [vmem:[#allocation2 + $0x1b0] sm:$0xff] %v466
        %531 = vst [vmem:[#allocation2 + $0x1b8] sm:$0xff] %v467
        %532 = vst [vmem:[#allocation2 + $0x1c0] sm:$0xff] %v468
        %533 = vst [vmem:[#allocation2 + $0x1c8] sm:$0xff] %v469
        %534 = vst [vmem:[#allocation2 + $0x1d0] sm:$0xff] %v470
        %535 = vst [vmem:[#allocation2 + $0x1d8] sm:$0xff] %v471
        %536 = vst [vmem:[#allocation2 + $0x1e0] sm:$0xff] %v472
        %537 = vst [vmem:[#allocation2 + $0x1e8] sm:$0xff] %v473
        %538 = vst [vmem:[#allocation2 + $0x1f0] sm:$0xff] %v474
        %539 = vst [vmem:[#allocation2 + $0x1f8] sm:$0xff] %v475
        // Predicated region
        $region33: #{tpu_custom_call.1} parent=23 // pred_check
          %p540 = pneg %p152
        $region34: #{tpu_custom_call.1} parent=23 // pred_check_branch
          %542 = sbr.rel (%p540) target = $region36
        $region35: #{tpu_custom_call.1} parent=23 // pred_region
          %v543 = vld [vmem:[#allocation2] sm:$0xff]
          %v544 = vld [vmem:[#allocation2 + $0x8] sm:$0xff]
          %v545 = vld [vmem:[#allocation2 + $0x10] sm:$0xff]
          %v546 = vld [vmem:[#allocation2 + $0x18] sm:$0xff]
          %v547 = vld [vmem:[#allocation2 + $0x20] sm:$0xff]
          %v548 = vld [vmem:[#allocation2 + $0x28] sm:$0xff]
          %v549 = vld [vmem:[#allocation2 + $0x30] sm:$0xff]
          %v550 = vld [vmem:[#allocation2 + $0x38] sm:$0xff]
          %v551 = vld [vmem:[#allocation2 + $0x40] sm:$0xff]
          %v552 = vld [vmem:[#allocation2 + $0x48] sm:$0xff]
          %v553 = vld [vmem:[#allocation2 + $0x50] sm:$0xff]
          %v554 = vld [vmem:[#allocation2 + $0x58] sm:$0xff]
          %v555 = vld [vmem:[#allocation2 + $0x60] sm:$0xff]
          %v556 = vld [vmem:[#allocation2 + $0x68] sm:$0xff]
          %v557 = vld [vmem:[#allocation2 + $0x70] sm:$0xff]
          %v558 = vld [vmem:[#allocation2 + $0x78] sm:$0xff]
          %v559 = vld [vmem:[#allocation2 + $0x80] sm:$0xff]
          %v560 = vld [vmem:[#allocation2 + $0x88] sm:$0xff]
          %v561 = vld [vmem:[#allocation2 + $0x90] sm:$0xff]
          %v562 = vld [vmem:[#allocation2 + $0x98] sm:$0xff]
          %v563 = vld [vmem:[#allocation2 + $0xa0] sm:$0xff]
          %v564 = vld [vmem:[#allocation2 + $0xa8] sm:$0xff]
          %v565 = vld [vmem:[#allocation2 + $0xb0] sm:$0xff]
          %v566 = vld [vmem:[#allocation2 + $0xb8] sm:$0xff]
          %v567 = vld [vmem:[#allocation2 + $0xc0] sm:$0xff]
          %v568 = vld [vmem:[#allocation2 + $0xc8] sm:$0xff]
          %v569 = vld [vmem:[#allocation2 + $0xd0] sm:$0xff]
          %v570 = vld [vmem:[#allocation2 + $0xd8] sm:$0xff]
          %v571 = vld [vmem:[#allocation2 + $0xe0] sm:$0xff]
          %v572 = vld [vmem:[#allocation2 + $0xe8] sm:$0xff]
          %v573 = vld [vmem:[#allocation2 + $0xf0] sm:$0xff]
          %v574 = vld [vmem:[#allocation2 + $0xf8] sm:$0xff]
          %v575 = vld [vmem:[#allocation2 + $0x100] sm:$0xff]
          %v576 = vld [vmem:[#allocation2 + $0x108] sm:$0xff]
          %v577 = vld [vmem:[#allocation2 + $0x110] sm:$0xff]
          %v578 = vld [vmem:[#allocation2 + $0x118] sm:$0xff]
          %v579 = vld [vmem:[#allocation2 + $0x120] sm:$0xff]
          %v580 = vld [vmem:[#allocation2 + $0x128] sm:$0xff]
          %v581 = vld [vmem:[#allocation2 + $0x130] sm:$0xff]
          %v582 = vld [vmem:[#allocation2 + $0x138] sm:$0xff]
          %v583 = vld [vmem:[#allocation2 + $0x140] sm:$0xff]
          %v584 = vld [vmem:[#allocation2 + $0x148] sm:$0xff]
          %v585 = vld [vmem:[#allocation2 + $0x150] sm:$0xff]
          %v586 = vld [vmem:[#allocation2 + $0x158] sm:$0xff]
          %v587 = vld [vmem:[#allocation2 + $0x160] sm:$0xff]
          %v588 = vld [vmem:[#allocation2 + $0x168] sm:$0xff]
          %v589 = vld [vmem:[#allocation2 + $0x170] sm:$0xff]
          %v590 = vld [vmem:[#allocation2 + $0x178] sm:$0xff]
          %v591 = vld [vmem:[#allocation2 + $0x180] sm:$0xff]
          %v592 = vld [vmem:[#allocation2 + $0x188] sm:$0xff]
          %v593 = vld [vmem:[#allocation2 + $0x190] sm:$0xff]
          %v594 = vld [vmem:[#allocation2 + $0x198] sm:$0xff]
          %v595 = vld [vmem:[#allocation2 + $0x1a0] sm:$0xff]
          %v596 = vld [vmem:[#allocation2 + $0x1a8] sm:$0xff]
          %v597 = vld [vmem:[#allocation2 + $0x1b0] sm:$0xff]
          %v598 = vld [vmem:[#allocation2 + $0x1b8] sm:$0xff]
          %v599 = vld [vmem:[#allocation2 + $0x1c0] sm:$0xff]
          %v600 = vld [vmem:[#allocation2 + $0x1c8] sm:$0xff]
          %v601 = vld [vmem:[#allocation2 + $0x1d0] sm:$0xff]
          %v602 = vld [vmem:[#allocation2 + $0x1d8] sm:$0xff]
          %v603 = vld [vmem:[#allocation2 + $0x1e0] sm:$0xff]
          %v604 = vld [vmem:[#allocation2 + $0x1e8] sm:$0xff]
          %v605 = vld [vmem:[#allocation2 + $0x1f0] sm:$0xff]
          %v606 = vld [vmem:[#allocation2 + $0x1f8] sm:$0xff]
          %v607 = vadd.f32 %v543, %v544
          %v608 = vadd.f32 %v607, %v545
          %v609 = vadd.f32 %v608, %v546
          %v610 = vadd.f32 %v609, %v547
          %v611 = vadd.f32 %v610, %v548
          %v612 = vadd.f32 %v611, %v549
          %v613 = vadd.f32 %v612, %v550
          %v614 = vadd.f32 %v613, %v551
          %v615 = vadd.f32 %v614, %v552
          %v616 = vadd.f32 %v615, %v553
          %v617 = vadd.f32 %v616, %v554
          %v618 = vadd.f32 %v617, %v555
          %v619 = vadd.f32 %v618, %v556
          %v620 = vadd.f32 %v619, %v557
          %v621 = vadd.f32 %v620, %v558
          %v622 = vadd.f32 %v621, %v559
          %v623 = vadd.f32 %v622, %v560
          %v624 = vadd.f32 %v623, %v561
          %v625 = vadd.f32 %v624, %v562
          %v626 = vadd.f32 %v625, %v563
          %v627 = vadd.f32 %v626, %v564
          %v628 = vadd.f32 %v627, %v565
          %v629 = vadd.f32 %v628, %v566
          %v630 = vadd.f32 %v629, %v567
          %v631 = vadd.f32 %v630, %v568
          %v632 = vadd.f32 %v631, %v569
          %v633 = vadd.f32 %v632, %v570
          %v634 = vadd.f32 %v633, %v571
          %v635 = vadd.f32 %v634, %v572
          %v636 = vadd.f32 %v635, %v573
          %v637 = vadd.f32 %v636, %v574
          %v638 = vadd.f32 %v637, %v575
          %v639 = vadd.f32 %v638, %v576
          %v640 = vadd.f32 %v639, %v577
          %v641 = vadd.f32 %v640, %v578
          %v642 = vadd.f32 %v641, %v579
          %v643 = vadd.f32 %v642, %v580
          %v644 = vadd.f32 %v643, %v581
          %v645 = vadd.f32 %v644, %v582
          %v646 = vadd.f32 %v645, %v583
          %v647 = vadd.f32 %v646, %v584
          %v648 = vadd.f32 %v647, %v585
          %v649 = vadd.f32 %v648, %v586
          %v650 = vadd.f32 %v649, %v587
          %v651 = vadd.f32 %v650, %v588
          %v652 = vadd.f32 %v651, %v589
          %v653 = vadd.f32 %v652, %v590
          %v654 = vadd.f32 %v653, %v591
          %v655 = vadd.f32 %v654, %v592
          %v656 = vadd.f32 %v655, %v593
          %v657 = vadd.f32 %v656, %v594
          %v658 = vadd.f32 %v657, %v595
          %v659 = vadd.f32 %v658, %v596
          %v660 = vadd.f32 %v659, %v597
          %v661 = vadd.f32 %v660, %v598
          %v662 = vadd.f32 %v661, %v599
          %v663 = vadd.f32 %v662, %v600
          %v664 = vadd.f32 %v663, %v601
          %v665 = vadd.f32 %v664, %v602
          %v666 = vadd.f32 %v665, %v603
          %v667 = vadd.f32 %v666, %v604
          %v668 = vadd.f32 %v667, %v605
          %v669 = vadd.f32 %v668, %v606
          %670 = vadd.xlane.f32.xlu0 %v669
          %v671 = vpop.xlane.xlu0 %670
          %v672 = vrot.slane %v671, 4
          %v673 = vadd.f32 %v671, %v672
          %v674 = vrot.slane %v673, 2
          %v675 = vadd.f32 %v673, %v674
          %v676 = vrot.slane %v675, 1
          %v677 = vadd.f32 %v675, %v676
          %s678 = vtos %v677
          %v679 = vstv %s678
          %v680 = vadd.f32 %v679, 0.0
          %681 = vst [vmem:[%s149] sm:$0xff] %v680
        $region36: #{tpu_custom_call.1} parent=23 // pred_fallthru
          _
        %s682 = sand.u32 %s66, 1
        %s683 = scalar_lea.sflag [#allocation5], %s682
        %s684 = sand.u32 %s66, 1
        %s685 = smul.addr %s684, 8
        %s686 = scalar_lea.vmem [#allocation6], %s685
        // Predicated region
        $region37: #{tpu_custom_call.1} parent=23 // pred_check
          %p687 = pneg %p76
        $region38: #{tpu_custom_call.1} parent=23 // pred_check_branch
          %689 = sbr.rel (%p687) target = $region40
        $region39: #{tpu_custom_call.1} parent=23 // pred_region
          %s691 = ssub.s32 128, 128
          %692 = vsyncadd %s683, %s691
          %s693 = smul.addr %s22, 128
          %s694 = scalar_lea.hbm %s1, %s693
          %s696 = sshll.u32 %s686, 4
          %s697 = int_to_ptr.vmem [resolvable:$true] %s696
          %699 = dma.vmem_to_hbm [thread:$0]  %s697, 128, %s694, %s683
        $region40: #{tpu_custom_call.1} parent=23 // pred_fallthru
          _
      $region24: #{tpu_custom_call.1} parent=5 // pred_fallthru
        _
      %p700 = scmp.le.s32.totalorder 2, %s13
      // Predicated region
      $region41: #{tpu_custom_call.1} parent=5 // pred_check
        %p701 = pneg %p700
      $region42: #{tpu_custom_call.1} parent=5 // pred_check_branch
        %703 = sbr.rel (%p701) target = $region44
      $region43: #{tpu_custom_call.1} parent=5 // pred_region
        %s704 = ssub.s32 %s13, 2
        // Predicated region
        $region45: #{tpu_custom_call.1} parent=43 // pred_check
          %p705 = pneg %p82
        $region46: #{tpu_custom_call.1} parent=43 // pred_check_branch
          %707 = sbr.rel (%p705) target = $region48
        $region47: #{tpu_custom_call.1} parent=43 // pred_region
          %s708 = sand.u32 %s67, 1
          %s709 = scalar_lea.sflag [#allocation5], %s708
          %s710 = sand.u32 %s67, 1
          %s711 = smul.addr %s710, 8
          %s712 = scalar_lea.vmem [#allocation6], %s711
          %713 = dma.done %s709, 128
        $region48: #{tpu_custom_call.1} parent=43 // pred_fallthru
          _
      $region44: #{tpu_custom_call.1} parent=5 // pred_fallthru
        _
    $region6: #{tpu_custom_call.1} parent=1 // loop_footer
      %s17 = sadd.s32 1, %s13
    $region7: #{tpu_custom_call.1} parent=1 // loop_footer_branch
      %12 = sbr.rel target = $region3
    $region8: #{tpu_custom_call.1} parent=1 // loop_exit
      _
    %714 = vsyncpa [#allocation4], 1
    %s715 = scalar_lea.sflag [#allocation4], 1
    %716 = vsyncpa %s715, 1
    %717 = vsyncpa [#allocation5], 1
    %s718 = scalar_lea.sflag [#allocation5], 1
    %719 = vsyncpa %s718, 1

</llo_original>
